<compile_context>
chip_gen: v5e
topology: v5e:2x2
jax: 0.10.0
libtpu: 0.0.40
codegen_flags: <defaults>
</compile_context>

<pallas_src>
import math
import jax
import jax.numpy as jnp
from jax.experimental import pallas as pl
from jax.experimental.pallas import tpu as pltpu


def mlp_kernel(x_ref, w2_ref, vecs_ref, b3_ref, o_ref):
    # x_ref:    (1, tb)   batch on lanes
    # w2_ref:   (20, 20)  middle layer weight (out, in)
    # vecs_ref: (20, 4)   columns = [w1, b1, b2, w3]
    # b3_ref:   (1, 1)
    x = x_ref[...]                                   # (1, tb)
    vecs = vecs_ref[...]                             # (20, 4)
    w1 = vecs[:, 0:1]                                # (20, 1)
    b1 = vecs[:, 1:2]
    b2 = vecs[:, 2:3]
    w3 = vecs[:, 3:4]

    # Layer 1: Linear(1, 20) == outer product -> pure VPU broadcast multiply.
    h1 = jnp.maximum(w1 * x + b1, 0.0)               # (20, tb)

    # Layer 2: Linear(20, 20) -> MXU.
    h2 = jnp.dot(w2_ref[...], h1, preferred_element_type=jnp.float32)
    h2 = jnp.maximum(h2 + b2, 0.0)                   # (20, tb)

    # Layer 3: Linear(20, 1) == weighted reduce over features (sublane axis).
    out = jnp.sum(h2 * w3, axis=0, keepdims=True) + b3_ref[...]   # (1, tb)
    o_ref[...] = out.astype(o_ref.dtype)


def mlp_forward(x, w1, b1, w2, b2, w3, b3, *, max_tile=8192):
    """x: (N, 1). Params in PyTorch Linear layout:
       w1 (20,1), b1 (20,), w2 (20,20), b2 (20,), w3 (1,20), b3 (1,)."""
    N = x.shape[0]
    x_row = x.reshape(1, N).astype(jnp.float32)      # free: same row-major bytes

    # Pack the four length-20 vectors into one resident (20, 4) array.
    vecs = jnp.stack(
        [w1[:, 0], b1, b2, w3[0, :]], axis=1).astype(jnp.float32)   # (20, 4)
    b3_2d = b3.reshape(1, 1).astype(jnp.float32)

    # Batch tile: one big lane-major tile when the batch fits comfortably;
    # otherwise 8192-lane tiles (f32 activations ~640 KiB per tile, far under
    # the v7x 32 MiB scoped-VMEM default) with zero-padding to a multiple.
    if N <= max_tile:
        tb = N
        n_pad = N
    else:
        tb = max_tile                                 # multiple of 128
        n_pad = pl.cdiv(N, tb) * tb
    if n_pad != N:
        x_row = jnp.pad(x_row, ((0, 0), (0, n_pad - N)))
    grid = (n_pad // tb,)

    const = lambda shape: pl.BlockSpec(shape, lambda i: (0, 0))
    cost = pl.CostEstimate(
        flops=int(2 * n_pad * (20 + 20 * 20 + 20)),
        transcendentals=0,
        bytes_accessed=int(4 * (2 * n_pad + 20 * 20 + 20 * 4 + 1)),
    )

    out_row = pl.pallas_call(
        mlp_kernel,
        out_shape=jax.ShapeDtypeStruct((1, n_pad), jnp.float32),
        grid_spec=pltpu.PrefetchScalarGridSpec(
            num_scalar_prefetch=0,
            grid=grid,
            in_specs=[
                pl.BlockSpec((1, tb), lambda i: (0, i)),   # x (lane-major batch)
                const(w2.shape),                           # (20, 20) resident
                const(vecs.shape),                         # (20, 4)  resident
                const(b3_2d.shape),                        # (1, 1)   resident
            ],
            out_specs=pl.BlockSpec((1, tb), lambda i: (0, i)),
        ),
        compiler_params=pltpu.CompilerParams(
            dimension_semantics=("parallel",)),
        cost_estimate=cost,
    )(x_row, w2, vecs, b3_2d)

    return out_row[:, :N].reshape(N, 1)


def _init_linear(key, fan_in, fan_out):
    # Deterministic init mimicking torch.nn.Linear default (+/- 1/sqrt(fan_in)).
    kw, kb = jax.random.split(key)
    bound = 1.0 / math.sqrt(fan_in)
    w = jax.random.uniform(kw, (fan_out, fan_in), jnp.float32, -bound, bound)
    b = jax.random.uniform(kb, (fan_out,), jnp.float32, -bound, bound)
    return w, b


if __name__ == "__main__":
    key = jax.random.PRNGKey(0)
    k1, k2, k3 = jax.random.split(key, 3)

    # Parameters: Linear(1,20), Linear(20,20), Linear(20,1)  (PyTorch layout)
    w1, b1 = _init_linear(k1, 1, 20)
    w2, b2 = _init_linear(k2, 20, 20)
    w3, b3 = _init_linear(k3, 20, 1)

    # Small input consistent with the module's forward: (N, 1) samples on a line.
    N = 256
    x = jnp.linspace(-2.0 * math.pi, 2.0 * math.pi, N,
                     dtype=jnp.float32).reshape(-1, 1)

    # Pure-JAX reference.
    h = jnp.maximum(x @ w1.T + b1, 0.0)
    h = jnp.maximum(h @ w2.T + b2, 0.0)
    ref = h @ w3.T + b3

    # Single-tile path (grid=(1,)).
    out = jax.block_until_ready(mlp_forward(x, w1, b1, w2, b2, w3, b3))
    assert out.shape == (N, 1)
    assert jnp.allclose(out, ref, atol=1e-5, rtol=1e-5), "single-tile mismatch"

    # Multi-step lane-tiled path (tb=128, grid=(2,)) to exercise tiling.
    out2 = jax.block_until_ready(
        mlp_forward(x, w1, b1, w2, b2, w3, b3, max_tile=128))
    assert jnp.allclose(out2, ref, atol=1e-5, rtol=1e-5), "tiled mismatch"

    print("KERNEL_OK")
</pallas_src>

<mosaic_0001>
module attributes {stable_mosaic.version = 11 : i64} {
  func.func @mlp_kernel(%arg0: i32, %arg1: memref<1x256xf32, #tpu.memory_space<vmem>>, %arg2: memref<20x20xf32, #tpu.memory_space<vmem>>, %arg3: memref<20x4xf32, #tpu.memory_space<vmem>>, %arg4: memref<1x1xf32, #tpu.memory_space<vmem>>, %arg5: memref<1x256xf32, #tpu.memory_space<vmem>>) attributes {dimension_semantics = [#tpu.dimension_semantics<parallel>], iteration_bounds = array<i64: 1>, scalar_prefetch = 0 : i64, scratch_operands = 0 : i64, tpu.core_type = #tpu.core_type<tc>, window_params = [{transform_indices = @transform_0, window_bounds = array<i64: 1, 256>}, {pipeline_mode = #tpu.pipeline_mode<synchronous>, transform_indices = @transform_1, window_bounds = array<i64: 20, 20>}, {pipeline_mode = #tpu.pipeline_mode<synchronous>, transform_indices = @transform_2, window_bounds = array<i64: 20, 4>}, {pipeline_mode = #tpu.pipeline_mode<synchronous>, transform_indices = @transform_3, window_bounds = array<i64: 1, 1>}, {transform_indices = @transform_4, window_bounds = array<i64: 1, 256>}]} {
    %c0 = arith.constant 0 : index
    %c0_0 = arith.constant 0 : index
    %0 = vector.load %arg1[%c0, %c0_0] : memref<1x256xf32, #tpu.memory_space<vmem>>, vector<1x256xf32>
    %c0_1 = arith.constant 0 : index
    %c0_2 = arith.constant 0 : index
    %1 = vector.load %arg3[%c0_1, %c0_2] : memref<20x4xf32, #tpu.memory_space<vmem>>, vector<20x4xf32>
    %2 = vector.extract_strided_slice %1 {offsets = [0, 0], sizes = [20, 1], strides = [1, 1]} : vector<20x4xf32> to vector<20x1xf32>
    %3 = vector.extract_strided_slice %1 {offsets = [0, 1], sizes = [20, 1], strides = [1, 1]} : vector<20x4xf32> to vector<20x1xf32>
    %4 = vector.extract_strided_slice %1 {offsets = [0, 2], sizes = [20, 1], strides = [1, 1]} : vector<20x4xf32> to vector<20x1xf32>
    %5 = vector.extract_strided_slice %1 {offsets = [0, 3], sizes = [20, 1], strides = [1, 1]} : vector<20x4xf32> to vector<20x1xf32>
    %6 = vector.broadcast %2 : vector<20x1xf32> to vector<20x256xf32>
    %7 = vector.broadcast %0 : vector<1x256xf32> to vector<20x256xf32>
    %8 = arith.mulf %6, %7 : vector<20x256xf32>
    %9 = vector.broadcast %3 : vector<20x1xf32> to vector<20x256xf32>
    %10 = arith.addf %8, %9 : vector<20x256xf32>
    %cst = arith.constant 0.000000e+00 : f32
    %11 = vector.broadcast %cst : f32 to vector<20x256xf32>
    %12 = arith.maximumf %10, %11 : vector<20x256xf32>
    %c0_3 = arith.constant 0 : index
    %c0_4 = arith.constant 0 : index
    %13 = vector.load %arg2[%c0_3, %c0_4] : memref<20x20xf32, #tpu.memory_space<vmem>>, vector<20x20xf32>
    %cst_5 = arith.constant dense<0.000000e+00> : vector<20x256xf32>
    %14 = tpu.matmul %13, %12, %cst_5 {dimension_numbers = #tpu.dot_dimension_numbers<[1], [0], [0], [1], [0, 0, 1, 1], [], []>} : vector<20x20xf32>, vector<20x256xf32>, vector<20x256xf32> -> vector<20x256xf32>
    %15 = vector.broadcast %4 : vector<20x1xf32> to vector<20x256xf32>
    %16 = arith.addf %14, %15 : vector<20x256xf32>
    %cst_6 = arith.constant 0.000000e+00 : f32
    %17 = vector.broadcast %cst_6 : f32 to vector<20x256xf32>
    %18 = arith.maximumf %16, %17 : vector<20x256xf32>
    %19 = vector.broadcast %5 : vector<20x1xf32> to vector<20x256xf32>
    %20 = arith.mulf %18, %19 : vector<20x256xf32>
    %cst_7 = arith.constant dense<0.000000e+00> : vector<256xf32>
    %21 = vector.multi_reduction <add>, %20, %cst_7 [0] : vector<20x256xf32> to vector<256xf32>
    %22 = vector.shape_cast %21 : vector<256xf32> to vector<1x256xf32>
    %c0_8 = arith.constant 0 : index
    %c0_9 = arith.constant 0 : index
    %23 = vector.load %arg4[%c0_8, %c0_9] : memref<1x1xf32, #tpu.memory_space<vmem>>, vector<1x1xf32>
    %24 = vector.broadcast %23 : vector<1x1xf32> to vector<1x256xf32>
    %25 = arith.addf %22, %24 : vector<1x256xf32>
    %c0_10 = arith.constant 0 : index
    %c0_11 = arith.constant 0 : index
    %26 = vector.load %arg5[%c0_10, %c0_11] : memref<1x256xf32, #tpu.memory_space<vmem>>, vector<1x256xf32>
    tpu.vector_store %arg5[%c0_10, %c0_11], %25 {strides = array<i32>} : memref<1x256xf32, #tpu.memory_space<vmem>>, vector<1x256xf32>,
    return
  }
  func.func @transform_0(%arg0: i32) -> (i32, i32) {
    %c0_i32 = arith.constant 0 : i32
    %c0_i32_0 = arith.constant 0 : i32
    return %c0_i32, %arg0 : i32, i32
  }
  func.func @transform_1(%arg0: i32) -> (i32, i32) {
    %c0_i32 = arith.constant 0 : i32
    %c0_i32_0 = arith.constant 0 : i32
    %c0_i32_1 = arith.constant 0 : i32
    return %c0_i32, %c0_i32_0 : i32, i32
  }
  func.func @transform_2(%arg0: i32) -> (i32, i32) {
    %c0_i32 = arith.constant 0 : i32
    %c0_i32_0 = arith.constant 0 : i32
    %c0_i32_1 = arith.constant 0 : i32
    return %c0_i32, %c0_i32_0 : i32, i32
  }
  func.func @transform_3(%arg0: i32) -> (i32, i32) {
    %c0_i32 = arith.constant 0 : i32
    %c0_i32_0 = arith.constant 0 : i32
    %c0_i32_1 = arith.constant 0 : i32
    return %c0_i32, %c0_i32_0 : i32, i32
  }
  func.func @transform_4(%arg0: i32) -> (i32, i32) {
    %c0_i32 = arith.constant 0 : i32
    %c0_i32_0 = arith.constant 0 : i32
    return %c0_i32, %arg0 : i32, i32
  }
}

</mosaic_0001>

<llo_original>
// kernel: tpu_custom_call.1
$region0: #{tpu_custom_call.1}
  #allocation0 [shape = 'u32[]', space=smem, size = 0x4, offset = 0x4, fixed_abs, tag = 'smem constant byte address 0x4 - core index']
  #allocation1 [shape = 'u32[72,128]{1,0:T(1,128)}', space=vmem, size = 0x9000, scoped, tag = 'internal scratch']
  #allocation2 [shape = 'f32[1,1]{1,0:T(1,128)S(1)}', space=vmem, size = 0x200, scoped, tag = 'scoped memory for tpu_custom_call.1']
  %s0 = inlined_call_operand.vmem [shape: f32[1,256], index: 0, kind: input, shape index: {}]
  %s1 = inlined_call_operand.vmem [shape: f32[20,20], index: 1, kind: input, shape index: {}]
  %s2 = inlined_call_operand.vmem [shape: f32[20,4], index: 2, kind: input, shape index: {}]
  %s3 = inlined_call_operand.<no memory space> [shape: f32[1,1], index: 3, kind: input, shape index: {}]
  %s4 = inlined_call_operand.hbm [shape: f32[1,256], index: 4, kind: output, shape index: {}]
  %s5 = sld [smem:[#allocation0]]
  $region26: #{tpu_custom_call.1} parent=0
    _
  %s7 = ssub.s32 1, %s5
  %s8 = scalar_select 0, %s7, %s5
  %v9 = vstv %s3
  %10 = vst [vmem:[#allocation2] sm:$0x1] %v9
  $region1: #{tpu_custom_call.1} parent=0
    #allocation3 [shape = 'u8[1024]{0}', space=vmem, size = 0x400, scoped, tag = 'output window, operand 0, single buffered']
    #allocation4 [shape = 's32[1]{0}', space=sflag, size = 0x4, scoped, tag = 'scoped memory for tpu_custom_call.1']
    %11 = vsyncpa [#allocation4], 0
    // Predicated region
    $region2: #{tpu_custom_call.1} parent=1 // pred_check
      _
    $region3: #{tpu_custom_call.1} parent=1 // pred_check_branch
      %13 = sbr.rel (0) target = $region5
    $region4: #{tpu_custom_call.1} parent=1 // pred_region
      _
    $region5: #{tpu_custom_call.1} parent=1 // pred_fallthru
      _
    // Predicated region
    $region6: #{tpu_custom_call.1} parent=1 // pred_check
      _
    $region7: #{tpu_custom_call.1} parent=1 // pred_check_branch
      %15 = sbr.rel (0) target = $region9
    $region8: #{tpu_custom_call.1} parent=1 // pred_region
      _
    $region9: #{tpu_custom_call.1} parent=1 // pred_fallthru
      _
    // Predicated region
    $region10: #{tpu_custom_call.1} parent=1 // pred_check
      _
    $region11: #{tpu_custom_call.1} parent=1 // pred_check_branch
      %17 = sbr.rel (0) target = $region13
    $region12: #{tpu_custom_call.1} parent=1 // pred_region
      _
    $region13: #{tpu_custom_call.1} parent=1 // pred_fallthru
      _
    // Predicated region
    $region14: #{tpu_custom_call.1} parent=1 // pred_check
      _
    $region15: #{tpu_custom_call.1} parent=1 // pred_check_branch
      %19 = sbr.rel (0) target = $region17
    $region16: #{tpu_custom_call.1} parent=1 // pred_region
      _
    $region17: #{tpu_custom_call.1} parent=1 // pred_fallthru
      _
    %v20 = vld [vmem:[%s0] sm:$0x3]
    %v21 = vld [vmem:[%s2] sm:$0xff]
    %v22 = vld [vmem:[%s2 + $0x8] sm:$0xff]
    %v23 = vld [vmem:[%s2 + $0x10] sm:$0xf]
    %25 = vset.pattern.permute.xlu0 0
    %26 = vperm.xlu0 %25, %v21
    %v27 = vpop.permute.xlu0 %26
    %30 = vset.pattern.permute.xlu0 0
    %31 = vperm.xlu0 %30, %v22
    %v32 = vpop.permute.xlu0 %31
    %35 = vset.pattern.permute.xlu0 0
    %36 = vperm.xlu0 %35, %v23
    %v37 = vpop.permute.xlu0 %36
    %v40 = vperm.slane %v20, 0
    %v41 = vperm.slane %v20, 1
    %v44 = vmul.f32 %v27, %v40
    %v45 = vmul.f32 %v27, %v41
    %v46 = vmul.f32 %v32, %v40
    %v47 = vmul.f32 %v32, %v41
    %v48 = vmul.f32 %v37, %v40
    %v49 = vmul.f32 %v37, %v41
    %50 = vset.pattern.permute.xlu0 1
    %51 = vperm.xlu0 %50, %v21
    %v52 = vpop.permute.xlu0 %51
    %54 = vset.pattern.permute.xlu0 1
    %55 = vperm.xlu0 %54, %v22
    %v56 = vpop.permute.xlu0 %55
    %58 = vset.pattern.permute.xlu0 1
    %59 = vperm.xlu0 %58, %v23
    %v60 = vpop.permute.xlu0 %59
    %v62 = vadd.f32 %v44, %v52
    %v63 = vadd.f32 %v45, %v52
    %v64 = vadd.f32 %v46, %v56
    %v65 = vadd.f32 %v47, %v56
    %v66 = vadd.f32 %v48, %v60
    %v67 = vadd.f32 %v49, %v60
    %v68 = vmax.f32 %v62, 0.0
    %v69 = vmax.f32 %v63, 0.0
    %v70 = vmax.f32 %v64, 0.0
    %v71 = vmax.f32 %v65, 0.0
    %v72 = vmax.f32 %v66, 0.0
    %v73 = vmax.f32 %v67, 0.0
    %v74 = vld [vmem:[%s1] sm:$0xff]
    %v75 = vld [vmem:[%s1 + $0x8] sm:$0xff]
    %v76 = vld [vmem:[%s1 + $0x10] sm:$0xf]
    %77 = vset.pattern.permute.xlu0 2
    %78 = vperm.xlu0 %77, %v21
    %v79 = vpop.permute.xlu0 %78
    %81 = vset.pattern.permute.xlu0 2
    %82 = vperm.xlu0 %81, %v22
    %v83 = vpop.permute.xlu0 %82
    %85 = vset.pattern.permute.xlu0 2
    %86 = vperm.xlu0 %85, %v23
    %v87 = vpop.permute.xlu0 %86
    %vm89 = vcmask 162816
    %v91 = vsel %vm89, %v74, 0
    %v94 = vsel %vm89, %v75, 0
    %v97 = vsel %vm89, %v76, 0
    %vm99 = vcmask 1043456
    %v101 = vsel %vm99, %v72, 0
    %v104 = vsel %vm99, %v73, 0
    %106 = vmatpush.msra.mxu0 0.0
    %107 = vmatpush.msra.mxu0 0.0
    %108 = vmatpush.msra.mxu0 0.0
    %109 = vmatpush.msra.mxu0 0.0
    %110 = vmatpush.msra.mxu0 0.0
    %111 = vmatpush.msra.mxu0 0.0
    %112 = vmatpush.msra.mxu0 0.0
    %113 = vmatpush.msra.mxu0 0.0
    %114 = vmatpush.msra.mxu0 0.0
    %115 = vmatpush.msra.mxu0 0.0
    %116 = vmatpush.msra.mxu0 0.0
    %117 = vmatpush.msra.mxu0 0.0
    %118 = vmatpush.msra.mxu0 0.0
    %119 = vmatpush.msra.mxu0 %v101
    %120 = vmatpush.msra.mxu0 %v70
    %121 = vmatpush.msra.mxu0 %v68
    %122 = vmatmul.f32.gmra.mxu0 %v91
    %v123 = vpop.f32.mrf.mxu0
    %v124 = vadd.f32 %v79, %v123
    %125 = vmatmul.f32.gmra.mxu0 %v94
    %v126 = vpop.f32.mrf.mxu0
    %v127 = vadd.f32 %v83, %v126
    %128 = vmatmul.f32.gmra.mxu0 %v97
    %v129 = vpop.f32.mrf.mxu0
    %v130 = vadd.f32 %v87, %v129
    %131 = vdwg.mxu0
    %132 = vmatpush.msra.mxu0 0.0
    %133 = vmatpush.msra.mxu0 0.0
    %134 = vmatpush.msra.mxu0 0.0
    %135 = vmatpush.msra.mxu0 0.0
    %136 = vmatpush.msra.mxu0 0.0
    %137 = vmatpush.msra.mxu0 0.0
    %138 = vmatpush.msra.mxu0 0.0
    %139 = vmatpush.msra.mxu0 0.0
    %140 = vmatpush.msra.mxu0 0.0
    %141 = vmatpush.msra.mxu0 0.0
    %142 = vmatpush.msra.mxu0 0.0
    %143 = vmatpush.msra.mxu0 0.0
    %144 = vmatpush.msra.mxu0 0.0
    %145 = vmatpush.msra.mxu0 %v104
    %146 = vmatpush.msra.mxu0 %v71
    %147 = vmatpush.msra.mxu0 %v69
    %148 = vmatmul.f32.gmra.mxu0 %v91
    %v149 = vpop.f32.mrf.mxu0
    %v150 = vadd.f32 %v79, %v149
    %151 = vmatmul.f32.gmra.mxu0 %v94
    %v152 = vpop.f32.mrf.mxu0
    %v153 = vadd.f32 %v83, %v152
    %154 = vmatmul.f32.gmra.mxu0 %v97
    %v155 = vpop.f32.mrf.mxu0
    %v156 = vadd.f32 %v87, %v155
    %157 = vdwg.mxu0
    %v158 = vmax.f32 %v124, 0.0
    %v159 = vmax.f32 %v150, 0.0
    %v160 = vmax.f32 %v127, 0.0
    %v161 = vmax.f32 %v153, 0.0
    %v162 = vmax.f32 %v130, 0.0
    %v163 = vmax.f32 %v156, 0.0
    %164 = vset.pattern.permute.xlu0 3
    %165 = vperm.xlu0 %164, %v21
    %v166 = vpop.permute.xlu0 %165
    %168 = vset.pattern.permute.xlu0 3
    %169 = vperm.xlu0 %168, %v22
    %v170 = vpop.permute.xlu0 %169
    %172 = vset.pattern.permute.xlu0 3
    %173 = vperm.xlu0 %172, %v23
    %v174 = vpop.permute.xlu0 %173
    %v176 = vmul.f32 %v158, %v166
    %v177 = vmul.f32 %v159, %v166
    %v178 = vmul.f32 %v160, %v170
    %v179 = vmul.f32 %v161, %v170
    %v180 = vmul.f32 %v162, %v174
    %v181 = vmul.f32 %v163, %v174
    %v182 = vadd.f32 %v176, %v178
    %v183 = vsel %vm99, %v180, 0.0
    %v184 = vadd.f32 %v182, %v183
    %v185 = vrot.slane %v184, 4
    %v186 = vadd.f32 %v184, %v185
    %v187 = vrot.slane %v186, 2
    %v188 = vadd.f32 %v186, %v187
    %v189 = vrot.slane %v188, 1
    %v190 = vadd.f32 %v188, %v189
    %v191 = vadd.f32 %v177, %v179
    %v192 = vsel %vm99, %v181, 0.0
    %v193 = vadd.f32 %v191, %v192
    %v194 = vrot.slane %v193, 4
    %v195 = vadd.f32 %v193, %v194
    %v196 = vrot.slane %v195, 2
    %v197 = vadd.f32 %v195, %v196
    %v198 = vrot.slane %v197, 1
    %v199 = vadd.f32 %v197, %v198
    %v200 = vld [vmem:[#allocation2] sm:$0x1]
    %202 = vset.pattern.permute.xlu0 0
    %203 = vperm.xlu0 %202, %v200
    %v204 = vpop.permute.xlu0 %203
    %v206 = vperm.slane %v204, 0
    %v207 = vadd.f32 %v190, %v206
    %v208 = vadd.f32 %v199, %v206
    %v211 = vrot.slane %v208, 7
    %vm212 = vcmask 1040384
    %v213 = vsel %vm212, %v207, %v211
    %v215 = vlaneseq
    %vm216 = vcmp.ge.s32.totalorder %v215, 0
    %vm217 = vcmp.lt.s32.totalorder %v215, 256
    %vm218 = vmand %vm216, %vm217
    %219 = vst.msk [vmem:[#allocation3] sm:$0x3] %vm218, %v213
    // Predicated region
    $region18: #{tpu_custom_call.1} parent=1 // pred_check
      _
    $region19: #{tpu_custom_call.1} parent=1 // pred_check_branch
      %221 = sbr.rel (0) target = $region21
    $region20: #{tpu_custom_call.1} parent=1 // pred_region
      %223 = vsyncadd [#allocation4], 0
      %s225 = sshll.u32 [#allocation3], 4
      %s226 = int_to_ptr.vmem [resolvable:$true] %s225
      %s227 = sshll.u32 %s4, 4
      %s228 = int_to_ptr.hbm [resolvable:$true] %s227
      %230 = dma.vmem_to_hbm [thread:$0]  %s226, 32, %s228, [#allocation4]
    $region21: #{tpu_custom_call.1} parent=1 // pred_fallthru
      _
    // Predicated region
    $region22: #{tpu_custom_call.1} parent=1 // pred_check
      _
    $region23: #{tpu_custom_call.1} parent=1 // pred_check_branch
      %232 = sbr.rel (0) target = $region25
    $region24: #{tpu_custom_call.1} parent=1 // pred_region
      %234 = dma.done [#allocation4], 32
    $region25: #{tpu_custom_call.1} parent=1 // pred_fallthru
      _
    %235 = vsyncpa [#allocation4], 1

</llo_original>
